<compile_context>
chip_gen: v6e
topology: v6e:2x2x1
jax: 0.10.0
libtpu: 0.0.40
codegen_flags: <defaults>
</compile_context>

<pallas_src>
import numpy as np
import jax
import jax.numpy as jnp
from jax import lax
from jax.experimental import pallas as pl
from jax.experimental.pallas import tpu as pltpu

# ---------------- configuration (small, consistent with the module) ----------
Z_DIM = 32
C_DIM = 16
W_DIM = 32
NUM_WS = 4
NUM_LAYERS = 2
LR_MULT = 0.01
BATCH = 2

_SQRT2 = float(np.sqrt(2.0))


# ----------------------------- kernel ----------------------------------------
def mapping_kernel(z_ref, c_ref, we_ref, wf_ref, b_ref, out_ref):
    """z_ref : [B, Z_DIM]      latent z
       c_ref : [B, C_DIM]      conditioning c
       we_ref: [C_DIM, W_DIM]  embed weight, pre-scaled (1/sqrt(c_dim)), transposed
       wf_ref: [3, W_DIM, W_DIM] pre-scaled, pre-transposed fc weights:
               [0] = (fc0_w[:, :z_dim] * g0).T
               [1] = (fc0_w[:, z_dim:] * g0).T
               [2] = (fc1_w * g1 * sqrt(2)).T   (fc0 lrelu gain folded in)
       b_ref : [3, W_DIM]      pre-scaled biases (embed, fc0, fc1)
       out_ref: [B, NUM_WS * W_DIM]  lane-dense replicated output
    """
    z = z_ref[...]           # [B, Z_DIM]
    c = c_ref[...]           # [B, C_DIM]
    b = b_ref[...]           # [3, W_DIM]

    # --- normalize z ---
    x = z * lax.rsqrt(jnp.mean(z * z, axis=1, keepdims=True) + 1e-8)

    # --- embed(c) (direct 16-deep contraction, no padding) + normalize ---
    y = jnp.dot(c, we_ref[...], preferred_element_type=jnp.float32) + b[0:1, :]
    y = y * lax.rsqrt(jnp.mean(y * y, axis=1, keepdims=True) + 1e-8)

    # --- fc0 (split contraction into one accumulator, no lane concat);
    #     its sqrt(2) lrelu gain is folded into wf_ref[2] ---
    h = (jnp.dot(x, wf_ref[0], preferred_element_type=jnp.float32)
         + jnp.dot(y, wf_ref[1], preferred_element_type=jnp.float32)
         + b[1:2, :])
    h = jnp.where(h >= 0, h, 0.2 * h)

    # --- fc1 ---
    h = jnp.dot(h, wf_ref[2], preferred_element_type=jnp.float32) + b[2:3, :]
    h = jnp.where(h >= 0, h, 0.2 * h) * _SQRT2

    # --- replicate across num_ws along the lane axis -> one unmasked store ---
    out_ref[...] = jnp.concatenate([h] * NUM_WS, axis=-1)   # [B, NUM_WS*W_DIM]


# ----------------------------- host-side packing (runs ONCE) -----------------
def pack_params(params):
    """Fold all gains into weights/biases and pack. Called once at init, not
    per forward call."""
    g_embed = 1.0 / np.sqrt(C_DIM)
    g_fc0 = LR_MULT / np.sqrt(Z_DIM + W_DIM)
    g_fc1 = LR_MULT / np.sqrt(W_DIM)

    we_t = (params["w_embed"] * g_embed).T.astype(jnp.float32)   # [C_DIM, W_DIM]

    w0 = params["w_fc0"] * g_fc0                                 # [W_DIM, Z+W]
    w0x = w0[:, :Z_DIM].T                                        # [Z_DIM, W_DIM]
    w0y = w0[:, Z_DIM:].T                                        # [W_DIM, W_DIM]
    # fold fc0's lrelu gain sqrt(2) into fc1's weight
    w1 = (params["w_fc1"] * (g_fc1 * _SQRT2)).T                  # [W_DIM, W_DIM]

    w_fc = jnp.stack([w0x, w0y, w1]).astype(jnp.float32)         # [3, 32, 32]
    b_all = jnp.stack([params["b_embed"],
                       params["b_fc0"] * LR_MULT,
                       params["b_fc1"] * LR_MULT]).astype(jnp.float32)  # [3, 32]
    return we_t, w_fc, b_all


@jax.jit
def mapping_network(z, c, we_t, w_fc, b_all):
    B = z.shape[0]
    vmem = pl.BlockSpec(memory_space=pltpu.MemorySpace.VMEM)
    w_rep = pl.pallas_call(
        mapping_kernel,
        out_shape=jax.ShapeDtypeStruct((B, NUM_WS * W_DIM), jnp.float32),
        in_specs=[vmem, vmem, vmem, vmem, vmem],
        out_specs=vmem,
    )(z.astype(jnp.float32), c.astype(jnp.float32), we_t, w_fc, b_all)
    # Row-major [B, NUM_WS*W_DIM] -> [B, NUM_WS, W_DIM] is a free reshape.
    return w_rep.reshape(B, NUM_WS, W_DIM)


# ----------------------------- pure-JAX reference ----------------------------
def reference_forward(z, c, params):
    """Mirrors the PyTorch forward exactly, from the raw (unscaled) params."""
    x = z.astype(jnp.float32)
    x = x * lax.rsqrt(jnp.mean(x * x, axis=1, keepdims=True) + 1e-8)

    we = params["w_embed"] * (1.0 / np.sqrt(C_DIM))
    y = c.astype(jnp.float32) @ we.T + params["b_embed"][None, :]
    y = y * lax.rsqrt(jnp.mean(y * y, axis=1, keepdims=True) + 1e-8)
    x = jnp.concatenate([x, y], axis=1)

    for wname, bname, in_f in (("w_fc0", "b_fc0", Z_DIM + W_DIM),
                               ("w_fc1", "b_fc1", W_DIM)):
        w = params[wname] * (LR_MULT / np.sqrt(in_f))
        b = params[bname] * LR_MULT
        x = x @ w.T + b[None, :]
        x = jnp.where(x >= 0, x, 0.2 * x) * _SQRT2

    return jnp.broadcast_to(x[:, None, :], (x.shape[0], NUM_WS, W_DIM))


# ----------------------------- init ------------------------------------------
def init_params(key):
    """Deterministic init matching the PyTorch __init__ shapes/scales."""
    ks = jax.random.split(key, 3)
    return {
        "w_embed": jax.random.normal(ks[0], (W_DIM, C_DIM), jnp.float32),
        "b_embed": jnp.zeros((W_DIM,), jnp.float32),
        "w_fc0": jax.random.normal(ks[1], (W_DIM, Z_DIM + W_DIM), jnp.float32)
                 * (1.0 / LR_MULT),
        "b_fc0": jnp.zeros((W_DIM,), jnp.float32),
        "w_fc1": jax.random.normal(ks[2], (W_DIM, W_DIM), jnp.float32)
                 * (1.0 / LR_MULT),
        "b_fc1": jnp.zeros((W_DIM,), jnp.float32),
    }


if __name__ == "__main__":
    key = jax.random.PRNGKey(0)
    k_params, k_z, k_c = jax.random.split(key, 3)

    params = init_params(k_params)
    # One-time packing (gains folded, transposed, stacked) outside the jit.
    we_t, w_fc, b_all = pack_params(params)

    z = jax.random.normal(k_z, (BATCH, Z_DIM), jnp.float32)
    c = jax.random.normal(k_c, (BATCH, C_DIM), jnp.float32)

    out = jax.block_until_ready(mapping_network(z, c, we_t, w_fc, b_all))
    ref = jax.block_until_ready(reference_forward(z, c, params))

    assert out.shape == (BATCH, NUM_WS, W_DIM), out.shape
    np.testing.assert_allclose(np.asarray(out), np.asarray(ref),
                               rtol=1e-5, atol=1e-5)
    print("KERNEL_OK")
</pallas_src>

<mosaic_0001>
module attributes {stable_mosaic.version = 11 : i64} {
  func.func @mapping_kernel(%arg0: memref<2x32xf32, #tpu.memory_space<vmem>>, %arg1: memref<2x16xf32, #tpu.memory_space<vmem>>, %arg2: memref<16x32xf32, #tpu.memory_space<vmem>>, %arg3: memref<3x32x32xf32, #tpu.memory_space<vmem>>, %arg4: memref<3x32xf32, #tpu.memory_space<vmem>>, %arg5: memref<2x128xf32, #tpu.memory_space<vmem>>) attributes {dimension_semantics = [], scalar_prefetch = 0 : i64, scratch_operands = 0 : i64, tpu.core_type = #tpu.core_type<tc>} {
    %c0 = arith.constant 0 : index
    %c0_0 = arith.constant 0 : index
    %0 = vector.load %arg0[%c0, %c0_0] : memref<2x32xf32, #tpu.memory_space<vmem>>, vector<2x32xf32>
    %c0_1 = arith.constant 0 : index
    %c0_2 = arith.constant 0 : index
    %1 = vector.load %arg1[%c0_1, %c0_2] : memref<2x16xf32, #tpu.memory_space<vmem>>, vector<2x16xf32>
    %c0_3 = arith.constant 0 : index
    %c0_4 = arith.constant 0 : index
    %2 = vector.load %arg4[%c0_3, %c0_4] : memref<3x32xf32, #tpu.memory_space<vmem>>, vector<3x32xf32>
    %3 = arith.mulf %0, %0 : vector<2x32xf32>
    %cst = arith.constant dense<0.000000e+00> : vector<2xf32>
    %4 = vector.multi_reduction <add>, %3, %cst [1] : vector<2x32xf32> to vector<2xf32>
    %5 = vector.shape_cast %4 : vector<2xf32> to vector<2x1xf32>
    %cst_5 = arith.constant 3.200000e+01 : f32
    %6 = vector.broadcast %cst_5 : f32 to vector<2x1xf32>
    %7 = arith.divf %5, %6 : vector<2x1xf32>
    %cst_6 = arith.constant 9.99999993E-9 : f32
    %8 = vector.broadcast %cst_6 : f32 to vector<2x1xf32>
    %9 = arith.addf %7, %8 : vector<2x1xf32>
    %10 = math.rsqrt %9 : vector<2x1xf32>
    %11 = vector.broadcast %10 : vector<2x1xf32> to vector<2x32xf32>
    %12 = arith.mulf %0, %11 : vector<2x32xf32>
    %c0_7 = arith.constant 0 : index
    %c0_8 = arith.constant 0 : index
    %13 = vector.load %arg2[%c0_7, %c0_8] : memref<16x32xf32, #tpu.memory_space<vmem>>, vector<16x32xf32>
    %cst_9 = arith.constant dense<0.000000e+00> : vector<2x32xf32>
    %14 = tpu.matmul %1, %13, %cst_9 {dimension_numbers = #tpu.dot_dimension_numbers<[1], [0], [0], [1], [0, 0, 1, 1], [], []>} : vector<2x16xf32>, vector<16x32xf32>, vector<2x32xf32> -> vector<2x32xf32>
    %15 = vector.extract_strided_slice %2 {offsets = [0, 0], sizes = [1, 32], strides = [1, 1]} : vector<3x32xf32> to vector<1x32xf32>
    %16 = vector.broadcast %15 : vector<1x32xf32> to vector<2x32xf32>
    %17 = arith.addf %14, %16 : vector<2x32xf32>
    %18 = arith.mulf %17, %17 : vector<2x32xf32>
    %cst_10 = arith.constant dense<0.000000e+00> : vector<2xf32>
    %19 = vector.multi_reduction <add>, %18, %cst_10 [1] : vector<2x32xf32> to vector<2xf32>
    %20 = vector.shape_cast %19 : vector<2xf32> to vector<2x1xf32>
    %cst_11 = arith.constant 3.200000e+01 : f32
    %21 = vector.broadcast %cst_11 : f32 to vector<2x1xf32>
    %22 = arith.divf %20, %21 : vector<2x1xf32>
    %cst_12 = arith.constant 9.99999993E-9 : f32
    %23 = vector.broadcast %cst_12 : f32 to vector<2x1xf32>
    %24 = arith.addf %22, %23 : vector<2x1xf32>
    %25 = math.rsqrt %24 : vector<2x1xf32>
    %26 = vector.broadcast %25 : vector<2x1xf32> to vector<2x32xf32>
    %27 = arith.mulf %17, %26 : vector<2x32xf32>
    %c0_13 = arith.constant 0 : index
    %c0_14 = arith.constant 0 : index
    %c0_15 = arith.constant 0 : index
    %28 = vector.load %arg3[%c0_13, %c0_14, %c0_15] : memref<3x32x32xf32, #tpu.memory_space<vmem>>, vector<1x32x32xf32>
    %29 = vector.shape_cast %28 : vector<1x32x32xf32> to vector<32x32xf32>
    %cst_16 = arith.constant dense<0.000000e+00> : vector<2x32xf32>
    %30 = tpu.matmul %12, %29, %cst_16 {dimension_numbers = #tpu.dot_dimension_numbers<[1], [0], [0], [1], [0, 0, 1, 1], [], []>} : vector<2x32xf32>, vector<32x32xf32>, vector<2x32xf32> -> vector<2x32xf32>
    %c1 = arith.constant 1 : index
    %c0_17 = arith.constant 0 : index
    %c0_18 = arith.constant 0 : index
    %31 = vector.load %arg3[%c1, %c0_17, %c0_18] : memref<3x32x32xf32, #tpu.memory_space<vmem>>, vector<1x32x32xf32>
    %32 = vector.shape_cast %31 : vector<1x32x32xf32> to vector<32x32xf32>
    %cst_19 = arith.constant dense<0.000000e+00> : vector<2x32xf32>
    %33 = tpu.matmul %27, %32, %cst_19 {dimension_numbers = #tpu.dot_dimension_numbers<[1], [0], [0], [1], [0, 0, 1, 1], [], []>} : vector<2x32xf32>, vector<32x32xf32>, vector<2x32xf32> -> vector<2x32xf32>
    %34 = arith.addf %30, %33 : vector<2x32xf32>
    %35 = vector.extract_strided_slice %2 {offsets = [1, 0], sizes = [1, 32], strides = [1, 1]} : vector<3x32xf32> to vector<1x32xf32>
    %36 = vector.broadcast %35 : vector<1x32xf32> to vector<2x32xf32>
    %37 = arith.addf %34, %36 : vector<2x32xf32>
    %cst_20 = arith.constant 0.000000e+00 : f32
    %38 = vector.broadcast %cst_20 : f32 to vector<2x32xf32>
    %39 = arith.cmpf oge, %37, %38 : vector<2x32xf32>
    %cst_21 = arith.constant 2.000000e-01 : f32
    %40 = vector.broadcast %cst_21 : f32 to vector<2x32xf32>
    %41 = arith.mulf %40, %37 : vector<2x32xf32>
    %42 = arith.select %39, %37, %41 : vector<2x32xi1>, vector<2x32xf32>
    %c2 = arith.constant 2 : index
    %c0_22 = arith.constant 0 : index
    %c0_23 = arith.constant 0 : index
    %43 = vector.load %arg3[%c2, %c0_22, %c0_23] : memref<3x32x32xf32, #tpu.memory_space<vmem>>, vector<1x32x32xf32>
    %44 = vector.shape_cast %43 : vector<1x32x32xf32> to vector<32x32xf32>
    %cst_24 = arith.constant dense<0.000000e+00> : vector<2x32xf32>
    %45 = tpu.matmul %42, %44, %cst_24 {dimension_numbers = #tpu.dot_dimension_numbers<[1], [0], [0], [1], [0, 0, 1, 1], [], []>} : vector<2x32xf32>, vector<32x32xf32>, vector<2x32xf32> -> vector<2x32xf32>
    %46 = vector.extract_strided_slice %2 {offsets = [2, 0], sizes = [1, 32], strides = [1, 1]} : vector<3x32xf32> to vector<1x32xf32>
    %47 = vector.broadcast %46 : vector<1x32xf32> to vector<2x32xf32>
    %48 = arith.addf %45, %47 : vector<2x32xf32>
    %cst_25 = arith.constant 0.000000e+00 : f32
    %49 = vector.broadcast %cst_25 : f32 to vector<2x32xf32>
    %50 = arith.cmpf oge, %48, %49 : vector<2x32xf32>
    %cst_26 = arith.constant 2.000000e-01 : f32
    %51 = vector.broadcast %cst_26 : f32 to vector<2x32xf32>
    %52 = arith.mulf %51, %48 : vector<2x32xf32>
    %53 = arith.select %50, %48, %52 : vector<2x32xi1>, vector<2x32xf32>
    %cst_27 = arith.constant 1.41421354 : f32
    %54 = vector.broadcast %cst_27 : f32 to vector<2x32xf32>
    %55 = arith.mulf %53, %54 : vector<2x32xf32>
    %56 = tpu.concatenate %55, %55, %55, %55 in 1 : vector<2x32xf32>, vector<2x32xf32>, vector<2x32xf32>, vector<2x32xf32> -> vector<2x128xf32>
    %c0_28 = arith.constant 0 : index
    %c0_29 = arith.constant 0 : index
    %57 = vector.load %arg5[%c0_28, %c0_29] : memref<2x128xf32, #tpu.memory_space<vmem>>, vector<2x128xf32>
    tpu.vector_store %arg5[%c0_28, %c0_29], %56 {strides = array<i32>} : memref<2x128xf32, #tpu.memory_space<vmem>>, vector<2x128xf32>,
    return
  }
}

</mosaic_0001>

<llo_original>
// kernel: mapping_network.1
$region0: #{mapping_network.1}
  #allocation0 [shape = 'u32[]', space=smem, size = 0x4, offset = 0x4, fixed_abs, tag = 'smem constant byte address 0x4 - core index']
  #allocation1 [shape = 'u32[144,128]{1,0:T(1,128)}', space=vmem, size = 0x12000, scoped, tag = 'internal scratch']
  %s0 = inlined_call_operand.hbm [shape: f32[2,32], index: 0, kind: input, shape index: {}]
  %s1 = inlined_call_operand.hbm [shape: f32[2,16], index: 1, kind: input, shape index: {}]
  %s2 = inlined_call_operand.hbm [shape: f32[16,32], index: 2, kind: input, shape index: {}]
  %s3 = inlined_call_operand.hbm [shape: f32[3,32,32], index: 3, kind: input, shape index: {}]
  %s4 = inlined_call_operand.vmem [shape: f32[3,32], index: 4, kind: input, shape index: {}]
  %s5 = inlined_call_operand.vmem [shape: f32[2,128], index: 5, kind: output, shape index: {}]
  %s6 = sld [smem:[#allocation0]]
  $region46: #{mapping_network.1} parent=0
    _
  %s8 = ssub.s32 1, %s6
  %s9 = scalar_select 0, %s8, %s6
  $region1: #{mapping_network.1} parent=0
    #allocation2 [shape = 'u8[1024]{0}', space=vmem, size = 0x400, scoped, tag = 'input window, operand 0, single buffered']
    #allocation3 [shape = 's32[1]{0}', space=sflag, size = 0x4, scoped, tag = 'scoped memory for mapping_network.1']
    #allocation4 [shape = 'u8[1024]{0}', space=vmem, size = 0x400, scoped, tag = 'input window, operand 1, single buffered']
    #allocation5 [shape = 's32[1]{0}', space=sflag, size = 0x4, scoped, tag = 'scoped memory for mapping_network.1']
    #allocation6 [shape = 'u8[8192]{0}', space=vmem, size = 0x2000, scoped, tag = 'input window, operand 2, single buffered']
    #allocation7 [shape = 'u8[49152]{0}', space=vmem, size = 0xc000, scoped, tag = 'input window, operand 3, single buffered']
    #allocation8 [shape = 's32[1]{0}', space=sflag, size = 0x4, scoped, tag = 'scoped memory for mapping_network.1']
    %10 = vsyncpa [#allocation3], 0
    %11 = vsyncpa [#allocation5], 0
    %12 = vsyncpa [#allocation8], 0
    // Predicated region
    $region2: #{mapping_network.1} parent=1 // pred_check
      _
    $region3: #{mapping_network.1} parent=1 // pred_check_branch
      %14 = sbr.rel (0) target = $region5
    $region4: #{mapping_network.1} parent=1 // pred_region
      %s16 = ssub.s32 32, 32
      %17 = vsyncadd [#allocation3], %s16
      %s19 = sshll.u32 [#allocation2], 4
      %s20 = int_to_ptr.vmem [resolvable:$true] %s19
      %22 = dma.hbm_to_vmem [thread:$0]  %s0, 32, %s20, [#allocation3]
    $region5: #{mapping_network.1} parent=1 // pred_fallthru
      _
    // Predicated region
    $region6: #{mapping_network.1} parent=1 // pred_check
      _
    $region7: #{mapping_network.1} parent=1 // pred_check_branch
      %24 = sbr.rel (0) target = $region9
    $region8: #{mapping_network.1} parent=1 // pred_region
      %s26 = ssub.s32 32, 32
      %27 = vsyncadd [#allocation5], %s26
      %s29 = sshll.u32 [#allocation4], 4
      %s30 = int_to_ptr.vmem [resolvable:$true] %s29
      %32 = dma.hbm_to_vmem [thread:$0]  %s1, 32, %s30, [#allocation5]
    $region9: #{mapping_network.1} parent=1 // pred_fallthru
      _
    // Predicated region
    $region10: #{mapping_network.1} parent=1 // pred_check
      _
    $region11: #{mapping_network.1} parent=1 // pred_check_branch
      %34 = sbr.rel (0) target = $region13
    $region12: #{mapping_network.1} parent=1 // pred_region
      %s36 = ssub.s32 256, 256
      %37 = vsyncadd [#allocation5], %s36
      %s38 = sshll.u32 [#allocation6], 4
      %s39 = int_to_ptr.vmem [resolvable:$true] %s38
      %44 = dma.hbm_to_vmem [thread:$0]  %s2, 256, %s39, [#allocation5], 128, 128, 8
    $region13: #{mapping_network.1} parent=1 // pred_fallthru
      _
    // Predicated region
    $region14: #{mapping_network.1} parent=1 // pred_check
      _
    $region15: #{mapping_network.1} parent=1 // pred_check_branch
      %46 = sbr.rel (0) target = $region17
    $region16: #{mapping_network.1} parent=1 // pred_region
      %s48 = ssub.s32 1536, 1536
      %49 = vsyncadd [#allocation8], %s48
      %s50 = sshll.u32 [#allocation7], 4
      %s51 = int_to_ptr.vmem [resolvable:$true] %s50
      %56 = dma.hbm_to_vmem [thread:$0]  %s3, 1536, %s51, [#allocation8], 128, 128, 8
    $region17: #{mapping_network.1} parent=1 // pred_fallthru
      _
    // Predicated region
    $region18: #{mapping_network.1} parent=1 // pred_check
      _
    $region19: #{mapping_network.1} parent=1 // pred_check_branch
      %58 = sbr.rel (0) target = $region21
    $region20: #{mapping_network.1} parent=1 // pred_region
      _
    $region21: #{mapping_network.1} parent=1 // pred_fallthru
      _
    // Predicated region
    $region22: #{mapping_network.1} parent=1 // pred_check
      _
    $region23: #{mapping_network.1} parent=1 // pred_check_branch
      %60 = sbr.rel (0) target = $region25
    $region24: #{mapping_network.1} parent=1 // pred_region
      %61 = dma.done [#allocation3], 32
    $region25: #{mapping_network.1} parent=1 // pred_fallthru
      _
    // Predicated region
    $region26: #{mapping_network.1} parent=1 // pred_check
      _
    $region27: #{mapping_network.1} parent=1 // pred_check_branch
      %63 = sbr.rel (0) target = $region29
    $region28: #{mapping_network.1} parent=1 // pred_region
      %64 = dma.done [#allocation5], 32
    $region29: #{mapping_network.1} parent=1 // pred_fallthru
      _
    // Predicated region
    $region30: #{mapping_network.1} parent=1 // pred_check
      _
    $region31: #{mapping_network.1} parent=1 // pred_check_branch
      %66 = sbr.rel (0) target = $region33
    $region32: #{mapping_network.1} parent=1 // pred_region
      %67 = dma.done [#allocation5], 256
    $region33: #{mapping_network.1} parent=1 // pred_fallthru
      _
    // Predicated region
    $region34: #{mapping_network.1} parent=1 // pred_check
      _
    $region35: #{mapping_network.1} parent=1 // pred_check_branch
      %69 = sbr.rel (0) target = $region37
    $region36: #{mapping_network.1} parent=1 // pred_region
      %70 = dma.done [#allocation8], 1536
    $region37: #{mapping_network.1} parent=1 // pred_fallthru
      _
    %v71 = vld [vmem:[#allocation2] sm:$0x3]
    %v72 = vld [vmem:[#allocation4] sm:$0x3]
    %v73 = vld [vmem:[%s4] sm:$0x7]
    %v74 = vmul.f32 %v71, %v71
    %vm75 = vcmask 254976
    %v76 = vsel %vm75, %v74, 0.0
    %77 = vadd.xlane.f32.xlu0 %v76
    %v78 = vpop.xlane.xlu0 %77
    %v79 = vrcp.pop 32.0
    %v80 = vmul.f32 %v78, %v79
    %v81 = vadd.f32 %v80, 1e-08
    %v82 = vrsqrt.pop %v81
    %v83 = vmul.f32 %v71, %v82
    %v84 = vld [vmem:[#allocation6] sm:$0xff]
    %v85 = vld [vmem:[#allocation6 + $0x8] sm:$0xff]
    %v86 = vlaneseq
    %v87 = vshrl.u32 %v86, 7
    %v88 = vsub.s32 0, %v87
    %v89 = vrot.slane %v73, %v88
    %vm90 = vcmask 130048
    %v92 = vsel %vm90, %v72, 0
    %94 = vmatprep.subr.mxu0 0.0
    %95 = vmatpush1.msra.mxu0 0.0
    %96 = vmatprep.subr.mxu0 0.0
    %97 = vmatpush1.msra.mxu0 0.0
    %98 = vmatprep.subr.mxu0 0.0
    %99 = vmatpush1.msra.mxu0 0.0
    %100 = vmatprep.subr.mxu0 0.0
    %101 = vmatpush1.msra.mxu0 0.0
    %102 = vmatprep.subr.mxu0 0.0
    %103 = vmatpush1.msra.mxu0 0.0
    %104 = vmatprep.subr.mxu0 0.0
    %105 = vmatpush1.msra.mxu0 0.0
    %106 = vmatprep.subr.mxu0 0.0
    %107 = vmatpush1.msra.mxu0 0.0
    %108 = vmatprep.subr.mxu0 0.0
    %109 = vmatpush1.msra.mxu0 0.0
    %110 = vmatprep.subr.mxu0 0.0
    %111 = vmatpush1.msra.mxu0 0.0
    %112 = vmatprep.subr.mxu0 0.0
    %113 = vmatpush1.msra.mxu0 0.0
    %114 = vmatprep.subr.mxu0 0.0
    %115 = vmatpush1.msra.mxu0 0.0
    %116 = vmatprep.subr.mxu0 0.0
    %117 = vmatpush1.msra.mxu0 0.0
    %118 = vmatprep.subr.mxu0 0.0
    %119 = vmatpush1.msra.mxu0 0.0
    %120 = vmatprep.subr.mxu0 0.0
    %121 = vmatpush1.msra.mxu0 0.0
    %122 = vmatprep.subr.mxu0 0.0
    %123 = vmatpush1.msra.mxu0 %v85
    %124 = vmatprep.subr.mxu0 0.0
    %125 = vmatpush1.msra.mxu0 %v84
    %126 = vmatprep.subr.mxu0 0.0
    %127 = vmatpush2.msra.mxu0 0.0
    %128 = vmatprep.subr.mxu0 0.0
    %129 = vmatpush2.msra.mxu0 0.0
    %130 = vmatprep.subr.mxu0 0.0
    %131 = vmatpush2.msra.mxu0 0.0
    %132 = vmatprep.subr.mxu0 0.0
    %133 = vmatpush2.msra.mxu0 0.0
    %134 = vmatprep.subr.mxu0 0.0
    %135 = vmatpush2.msra.mxu0 0.0
    %136 = vmatprep.subr.mxu0 0.0
    %137 = vmatpush2.msra.mxu0 0.0
    %138 = vmatprep.subr.mxu0 0.0
    %139 = vmatpush2.msra.mxu0 0.0
    %140 = vmatprep.subr.mxu0 0.0
    %141 = vmatpush2.msra.mxu0 0.0
    %142 = vmatprep.subr.mxu0 0.0
    %143 = vmatpush2.msra.mxu0 0.0
    %144 = vmatprep.subr.mxu0 0.0
    %145 = vmatpush2.msra.mxu0 0.0
    %146 = vmatprep.subr.mxu0 0.0
    %147 = vmatpush2.msra.mxu0 0.0
    %148 = vmatprep.subr.mxu0 0.0
    %149 = vmatpush2.msra.mxu0 0.0
    %150 = vmatprep.subr.mxu0 0.0
    %151 = vmatpush2.msra.mxu0 0.0
    %152 = vmatprep.subr.mxu0 0.0
    %153 = vmatpush2.msra.mxu0 0.0
    %154 = vmatprep.subr.mxu0 0.0
    %155 = vmatpush2.msra.mxu0 0.0
    %156 = vmatprep.subr.mxu0 0.0
    %157 = vmatpush2.msra.mxu0 0.0
    %158 = vmatprep.mubr.f32.mxu0 0.0
    %159 = vmatmul.mubr.f32.gmra.mxu0 %v92
    %v160 = vpop.f32.mrf.mxu0
    %v161 = vadd.f32 %v89, %v160
    %v162 = vpop.f32.mrf.mxu0
    %163 = vdwg.mxu0
    %v164 = vmul.f32 %v161, %v161
    %v165 = vsel %vm75, %v164, 0.0
    %166 = vadd.xlane.f32.xlu0 %v165
    %v167 = vpop.xlane.xlu0 %166
    %v168 = vmul.f32 %v167, %v79
    %v169 = vadd.f32 %v168, 1e-08
    %v170 = vrsqrt.pop %v169
    %v171 = vmul.f32 %v161, %v170
    %v172 = vld [vmem:[#allocation7] sm:$0xff]
    %v173 = vld [vmem:[#allocation7 + $0x8] sm:$0xff]
    %v174 = vld [vmem:[#allocation7 + $0x10] sm:$0xff]
    %v175 = vld [vmem:[#allocation7 + $0x18] sm:$0xff]
    %s176 = scalar_lea.vmem [#allocation7], 32
    %v177 = vld [vmem:[%s176] sm:$0xff]
    %v178 = vld [vmem:[%s176 + $0x8] sm:$0xff]
    %v179 = vld [vmem:[%s176 + $0x10] sm:$0xff]
    %v180 = vld [vmem:[%s176 + $0x18] sm:$0xff]
    %vm181 = vcmask 261120
    %v183 = vsel %vm181, %v171, 0
    %185 = vmatprep.subr.mxu0 0.0
    %186 = vmatpush1.msra.mxu0 0.0
    %187 = vmatprep.subr.mxu0 0.0
    %188 = vmatpush1.msra.mxu0 0.0
    %189 = vmatprep.subr.mxu0 0.0
    %190 = vmatpush1.msra.mxu0 0.0
    %191 = vmatprep.subr.mxu0 0.0
    %192 = vmatpush1.msra.mxu0 0.0
    %193 = vmatprep.subr.mxu0 0.0
    %194 = vmatpush1.msra.mxu0 0.0
    %195 = vmatprep.subr.mxu0 0.0
    %196 = vmatpush1.msra.mxu0 0.0
    %197 = vmatprep.subr.mxu0 0.0
    %198 = vmatpush1.msra.mxu0 0.0
    %199 = vmatprep.subr.mxu0 0.0
    %200 = vmatpush1.msra.mxu0 0.0
    %201 = vmatprep.subr.mxu0 0.0
    %202 = vmatpush1.msra.mxu0 0.0
    %203 = vmatprep.subr.mxu0 0.0
    %204 = vmatpush1.msra.mxu0 0.0
    %205 = vmatprep.subr.mxu0 0.0
    %206 = vmatpush1.msra.mxu0 0.0
    %207 = vmatprep.subr.mxu0 0.0
    %208 = vmatpush1.msra.mxu0 0.0
    %209 = vmatprep.subr.mxu0 0.0
    %210 = vmatpush1.msra.mxu0 %v180
    %211 = vmatprep.subr.mxu0 0.0
    %212 = vmatpush1.msra.mxu0 %v179
    %213 = vmatprep.subr.mxu0 0.0
    %214 = vmatpush1.msra.mxu0 %v178
    %215 = vmatprep.subr.mxu0 0.0
    %216 = vmatpush1.msra.mxu0 %v177
    %217 = vmatprep.subr.mxu0 0.0
    %218 = vmatpush2.msra.mxu0 0.0
    %219 = vmatprep.subr.mxu0 0.0
    %220 = vmatpush2.msra.mxu0 0.0
    %221 = vmatprep.subr.mxu0 0.0
    %222 = vmatpush2.msra.mxu0 0.0
    %223 = vmatprep.subr.mxu0 0.0
    %224 = vmatpush2.msra.mxu0 0.0
    %225 = vmatprep.subr.mxu0 0.0
    %226 = vmatpush2.msra.mxu0 0.0
    %227 = vmatprep.subr.mxu0 0.0
    %228 = vmatpush2.msra.mxu0 0.0
    %229 = vmatprep.subr.mxu0 0.0
    %230 = vmatpush2.msra.mxu0 0.0
    %231 = vmatprep.subr.mxu0 0.0
    %232 = vmatpush2.msra.mxu0 0.0
    %233 = vmatprep.subr.mxu0 0.0
    %234 = vmatpush2.msra.mxu0 0.0
    %235 = vmatprep.subr.mxu0 0.0
    %236 = vmatpush2.msra.mxu0 0.0
    %237 = vmatprep.subr.mxu0 0.0
    %238 = vmatpush2.msra.mxu0 0.0
    %239 = vmatprep.subr.mxu0 0.0
    %240 = vmatpush2.msra.mxu0 0.0
    %241 = vmatprep.subr.mxu0 0.0
    %242 = vmatpush2.msra.mxu0 0.0
    %243 = vmatprep.subr.mxu0 0.0
    %244 = vmatpush2.msra.mxu0 0.0
    %245 = vmatprep.subr.mxu0 0.0
    %246 = vmatpush2.msra.mxu0 0.0
    %247 = vmatprep.subr.mxu0 0.0
    %248 = vmatpush2.msra.mxu0 0.0
    %249 = vmatprep.mubr.f32.mxu0 0.0
    %250 = vmatmul.mubr.f32.gmra.mxu0 %v183
    %v251 = vpop.f32.mrf.mxu0
    %v252 = vadd.f32 0.0, %v251
    %v253 = vpop.f32.mrf.mxu0
    %254 = vdwg.mxu0
    %v256 = vsel %vm181, %v83, 0
    %258 = vmatprep.subr.mxu0 0.0
    %259 = vmatpush1.msra.mxu0 0.0
    %260 = vmatprep.subr.mxu0 0.0
    %261 = vmatpush1.msra.mxu0 0.0
    %262 = vmatprep.subr.mxu0 0.0
    %263 = vmatpush1.msra.mxu0 0.0
    %264 = vmatprep.subr.mxu0 0.0
    %265 = vmatpush1.msra.mxu0 0.0
    %266 = vmatprep.subr.mxu0 0.0
    %267 = vmatpush1.msra.mxu0 0.0
    %268 = vmatprep.subr.mxu0 0.0
    %269 = vmatpush1.msra.mxu0 0.0
    %270 = vmatprep.subr.mxu0 0.0
    %271 = vmatpush1.msra.mxu0 0.0
    %272 = vmatprep.subr.mxu0 0.0
    %273 = vmatpush1.msra.mxu0 0.0
    %274 = vmatprep.subr.mxu0 0.0
    %275 = vmatpush1.msra.mxu0 0.0
    %276 = vmatprep.subr.mxu0 0.0
    %277 = vmatpush1.msra.mxu0 0.0
    %278 = vmatprep.subr.mxu0 0.0
    %279 = vmatpush1.msra.mxu0 0.0
    %280 = vmatprep.subr.mxu0 0.0
    %281 = vmatpush1.msra.mxu0 0.0
    %282 = vmatprep.subr.mxu0 0.0
    %283 = vmatpush1.msra.mxu0 %v175
    %284 = vmatprep.subr.mxu0 0.0
    %285 = vmatpush1.msra.mxu0 %v174
    %286 = vmatprep.subr.mxu0 0.0
    %287 = vmatpush1.msra.mxu0 %v173
    %288 = vmatprep.subr.mxu0 0.0
    %289 = vmatpush1.msra.mxu0 %v172
    %290 = vmatprep.subr.mxu0 0.0
    %291 = vmatpush2.msra.mxu0 0.0
    %292 = vmatprep.subr.mxu0 0.0
    %293 = vmatpush2.msra.mxu0 0.0
    %294 = vmatprep.subr.mxu0 0.0
    %295 = vmatpush2.msra.mxu0 0.0
    %296 = vmatprep.subr.mxu0 0.0
    %297 = vmatpush2.msra.mxu0 0.0
    %298 = vmatprep.subr.mxu0 0.0
    %299 = vmatpush2.msra.mxu0 0.0
    %300 = vmatprep.subr.mxu0 0.0
    %301 = vmatpush2.msra.mxu0 0.0
    %302 = vmatprep.subr.mxu0 0.0
    %303 = vmatpush2.msra.mxu0 0.0
    %304 = vmatprep.subr.mxu0 0.0
    %305 = vmatpush2.msra.mxu0 0.0
    %306 = vmatprep.subr.mxu0 0.0
    %307 = vmatpush2.msra.mxu0 0.0
    %308 = vmatprep.subr.mxu0 0.0
    %309 = vmatpush2.msra.mxu0 0.0
    %310 = vmatprep.subr.mxu0 0.0
    %311 = vmatpush2.msra.mxu0 0.0
    %312 = vmatprep.subr.mxu0 0.0
    %313 = vmatpush2.msra.mxu0 0.0
    %314 = vmatprep.subr.mxu0 0.0
    %315 = vmatpush2.msra.mxu0 0.0
    %316 = vmatprep.subr.mxu0 0.0
    %317 = vmatpush2.msra.mxu0 0.0
    %318 = vmatprep.subr.mxu0 0.0
    %319 = vmatpush2.msra.mxu0 0.0
    %320 = vmatprep.subr.mxu0 0.0
    %321 = vmatpush2.msra.mxu0 0.0
    %322 = vmatprep.mubr.f32.mxu0 0.0
    %323 = vmatmul.mubr.f32.gmra.mxu0 %v256
    %v324 = vpop.f32.mrf.mxu0
    %v325 = vadd.f32 %v252, %v324
    %v326 = vpop.f32.mrf.mxu0
    %327 = vdwg.mxu0
    %v328 = vlaneseq
    %v329 = vshrl.u32 %v328, 7
    %v330 = vsub.s32 1, %v329
    %v331 = vrot.slane %v73, %v330
    %v332 = vadd.f32 %v325, %v331
    %vm333 = vcmp.ge.f32.partialorder %v332, 0.0
    %v334 = vmul.f32 %v332, 0.2
    %v335 = vsel %vm333, %v332, %v334
    %s336 = scalar_lea.vmem [#allocation7], 64
    %v337 = vld [vmem:[%s336] sm:$0xff]
    %v338 = vld [vmem:[%s336 + $0x8] sm:$0xff]
    %v339 = vld [vmem:[%s336 + $0x10] sm:$0xff]
    %v340 = vld [vmem:[%s336 + $0x18] sm:$0xff]
    %v341 = vlaneseq
    %v342 = vshrl.u32 %v341, 7
    %v343 = vsub.s32 2, %v342
    %v344 = vrot.slane %v73, %v343
    %v346 = vsel %vm181, %v335, 0
    %348 = vmatprep.subr.mxu0 0.0
    %349 = vmatpush1.msra.mxu0 0.0
    %350 = vmatprep.subr.mxu0 0.0
    %351 = vmatpush1.msra.mxu0 0.0
    %352 = vmatprep.subr.mxu0 0.0
    %353 = vmatpush1.msra.mxu0 0.0
    %354 = vmatprep.subr.mxu0 0.0
    %355 = vmatpush1.msra.mxu0 0.0
    %356 = vmatprep.subr.mxu0 0.0
    %357 = vmatpush1.msra.mxu0 0.0
    %358 = vmatprep.subr.mxu0 0.0
    %359 = vmatpush1.msra.mxu0 0.0
    %360 = vmatprep.subr.mxu0 0.0
    %361 = vmatpush1.msra.mxu0 0.0
    %362 = vmatprep.subr.mxu0 0.0
    %363 = vmatpush1.msra.mxu0 0.0
    %364 = vmatprep.subr.mxu0 0.0
    %365 = vmatpush1.msra.mxu0 0.0
    %366 = vmatprep.subr.mxu0 0.0
    %367 = vmatpush1.msra.mxu0 0.0
    %368 = vmatprep.subr.mxu0 0.0
    %369 = vmatpush1.msra.mxu0 0.0
    %370 = vmatprep.subr.mxu0 0.0
    %371 = vmatpush1.msra.mxu0 0.0
    %372 = vmatprep.subr.mxu0 0.0
    %373 = vmatpush1.msra.mxu0 %v340
    %374 = vmatprep.subr.mxu0 0.0
    %375 = vmatpush1.msra.mxu0 %v339
    %376 = vmatprep.subr.mxu0 0.0
    %377 = vmatpush1.msra.mxu0 %v338
    %378 = vmatprep.subr.mxu0 0.0
    %379 = vmatpush1.msra.mxu0 %v337
    %380 = vmatprep.subr.mxu0 0.0
    %381 = vmatpush2.msra.mxu0 0.0
    %382 = vmatprep.subr.mxu0 0.0
    %383 = vmatpush2.msra.mxu0 0.0
    %384 = vmatprep.subr.mxu0 0.0
    %385 = vmatpush2.msra.mxu0 0.0
    %386 = vmatprep.subr.mxu0 0.0
    %387 = vmatpush2.msra.mxu0 0.0
    %388 = vmatprep.subr.mxu0 0.0
    %389 = vmatpush2.msra.mxu0 0.0
    %390 = vmatprep.subr.mxu0 0.0
    %391 = vmatpush2.msra.mxu0 0.0
    %392 = vmatprep.subr.mxu0 0.0
    %393 = vmatpush2.msra.mxu0 0.0
    %394 = vmatprep.subr.mxu0 0.0
    %395 = vmatpush2.msra.mxu0 0.0
    %396 = vmatprep.subr.mxu0 0.0
    %397 = vmatpush2.msra.mxu0 0.0
    %398 = vmatprep.subr.mxu0 0.0
    %399 = vmatpush2.msra.mxu0 0.0
    %400 = vmatprep.subr.mxu0 0.0
    %401 = vmatpush2.msra.mxu0 0.0
    %402 = vmatprep.subr.mxu0 0.0
    %403 = vmatpush2.msra.mxu0 0.0
    %404 = vmatprep.subr.mxu0 0.0
    %405 = vmatpush2.msra.mxu0 0.0
    %406 = vmatprep.subr.mxu0 0.0
    %407 = vmatpush2.msra.mxu0 0.0
    %408 = vmatprep.subr.mxu0 0.0
    %409 = vmatpush2.msra.mxu0 0.0
    %410 = vmatprep.subr.mxu0 0.0
    %411 = vmatpush2.msra.mxu0 0.0
    %412 = vmatprep.mubr.f32.mxu0 0.0
    %413 = vmatmul.mubr.f32.gmra.mxu0 %v346
    %v414 = vpop.f32.mrf.mxu0
    %v415 = vadd.f32 %v344, %v414
    %v416 = vpop.f32.mrf.mxu0
    %417 = vdwg.mxu0
    %vm418 = vcmp.ge.f32.partialorder %v415, 0.0
    %v419 = vmul.f32 %v415, 0.2
    %v420 = vsel %vm418, %v415, %v419
    %v421 = vmul.f32 %v420, 1.4142135
    %423 = vrot.lane.b32.xlu0 %v421, 32
    %v424 = vpop.permute.xlu0 %423
    %426 = vrot.lane.b32.xlu0 %v421, 64
    %v427 = vpop.permute.xlu0 %426
    %429 = vrot.lane.b32.xlu0 %v421, 96
    %v430 = vpop.permute.xlu0 %429
    %v432 = vsel %vm181, %v421, %v424
    %vm433 = vcmask 523264
    %v434 = vsel %vm433, %v432, %v427
    %vm435 = vcmask 785408
    %v436 = vsel %vm435, %v434, %v430
    %437 = vst [vmem:[%s5] sm:$0x3] %v436
    // Predicated region
    $region38: #{mapping_network.1} parent=1 // pred_check
      _
    $region39: #{mapping_network.1} parent=1 // pred_check_branch
      %439 = sbr.rel (0) target = $region41
    $region40: #{mapping_network.1} parent=1 // pred_region
      _
    $region41: #{mapping_network.1} parent=1 // pred_fallthru
      _
    // Predicated region
    $region42: #{mapping_network.1} parent=1 // pred_check
      _
    $region43: #{mapping_network.1} parent=1 // pred_check_branch
      %441 = sbr.rel (0) target = $region45
    $region44: #{mapping_network.1} parent=1 // pred_region
      _
    $region45: #{mapping_network.1} parent=1 // pred_fallthru
      _
    %442 = vsyncpa [#allocation3], 1
    %443 = vsyncpa [#allocation5], 1
    %444 = vsyncpa [#allocation8], 1

</llo_original>
